<compile_context>
chip_gen: v5e
topology: v5e:2x2
jax: 0.10.0
libtpu: 0.0.40
codegen_flags: <defaults>
</compile_context>

<pallas_src>
import functools

import jax
import jax.numpy as jnp
from jax import lax
from jax.experimental import pallas as pl
from jax.experimental.pallas import tpu as pltpu


def _round_up(v, m):
    return ((v + m - 1) // m) * m


def _device_kind():
    try:
        return (jax.devices()[0].device_kind or "").lower()
    except Exception:
        return ""


def _gradloss_kernel(wmask_ref, x_ref, y_ref, hacc_ref, wacc_ref, *,
                     planes, block_planes, steps, width, needs_mask):
    """One grid step (p, i).

    wmask_ref : (1, L-1) f32  0/1 lane mask, zero at plane-row boundaries
    x_ref/y_ref: (B, L)       input blocks (any float dtype; upcast to f32)
    hacc_ref  : (1, 1, L-W) f32 resident h-grad sum-of-squares accumulator
    wacc_ref  : (1, 1, L-1) f32 resident w-grad sum-of-squares accumulator
    """
    i = pl.program_id(1)

    @pl.when(i == 0)
    def _():
        hacc_ref[...] = jnp.zeros_like(hacc_ref)
        wacc_ref[...] = jnp.zeros_like(wacc_ref)

    # grad(x) - grad(y) == grad(x - y): fold the subtraction first.
    d = x_ref[...].astype(jnp.float32) - y_ref[...].astype(jnp.float32)  # (B, L)
    L = d.shape[1]
    W = width

    # TODO(synk): pltpu.roll(d, ...) along the lane axis would avoid the
    # materialized shifted copies these lane-offset slices can create; plain
    # slices are kept here for lowering robustness on all generations.
    dh = d[:, W:] - d[:, :L - W]          # (B, L-W): every position is a valid h-diff
    dw = d[:, 1:] - d[:, :L - 1]          # (B, L-1): invalid at row boundaries

    dh2 = dh * dh
    dw2 = dw * dw * wmask_ref[...]        # zero out row-boundary positions

    if needs_mask:
        # Ragged tail: rows whose global plane index >= `planes` hold
        # unspecified data; select 0 for them (where(), so NaN-safe).
        start = (pl.program_id(0) * steps + i) * block_planes
        row = lax.broadcasted_iota(jnp.int32, (block_planes, 1), 0) + start
        valid = row < planes
        dh2 = jnp.where(valid, dh2, 0.0)
        dw2 = jnp.where(valid, dw2, 0.0)

    # Partial (sublane) reduction only; cross-lane collapse is deferred to JAX.
    hacc_ref[...] += jnp.sum(dh2, axis=0, keepdims=True)[None]   # (1, 1, L-W)
    wacc_ref[...] += jnp.sum(dw2, axis=0, keepdims=True)[None]   # (1, 1, L-1)


def grad_loss(x, y, grad_loss_weight=1.0, block_planes=None):
    """Pallas implementation of GradLoss.forward.

    x, y: (N, C, H, W), float32 or bfloat16 (bf16 inputs halve HBM traffic;
    all arithmetic and accumulation is performed in float32).
    """
    assert x.shape == y.shape, (x.shape, y.shape)
    N, C, H, W = x.shape
    assert H >= 2 and W >= 2, "GradLoss needs H >= 2 and W >= 2"
    planes = N * C
    L = H * W

    # ---- generation-aware block / VMEM targets -----------------------------
    kind = _device_kind()
    is_v7 = ("v7" in kind) or ("7x" in kind)
    is_v6 = "v6" in kind
    if is_v7:
        vmem_limit = 48 * 1024 * 1024      # leave headroom under 64 MiB physical
        target_block_bytes = 4 * 1024 * 1024
    elif is_v6:
        vmem_limit = 64 * 1024 * 1024      # 128 MiB physical on v6e
        target_block_bytes = 4 * 1024 * 1024
    else:                                   # v5e / unknown: conservative
        vmem_limit = 32 * 1024 * 1024
        target_block_bytes = 2 * 1024 * 1024

    itemsize = jnp.dtype(x.dtype).itemsize
    sub = {4: 8, 2: 16, 1: 32}.get(itemsize, 8)   # sublane packing granularity

    # Per-plane bytes in the *padded* lane layout (last dim rounded to 128).
    lanes = _round_up(L, 128)
    in_plane_bytes = lanes * itemsize
    f32_plane_bytes = lanes * 4

    if block_planes is None:
        # 2 inputs x 2 pipeline buffers of the input dtype + ~6 block-sized f32
        # temporaries (d, shifted slices, squares) live inside the body.
        per_plane_budget = 4 * in_plane_bytes + 6 * f32_plane_bytes
        b_budget = max(1, int(0.6 * vmem_limit) // per_plane_budget)
        b_target = max(1, target_block_bytes // in_plane_bytes)
        block_planes = min(b_budget, b_target, planes)
    B = min(int(block_planes), planes)
    if planes <= sub:
        B = planes                              # full-extent dim: always legal
    else:
        B = max(sub, (B // sub) * sub)          # keep sublane-aligned blocks
    # TODO(synk): tile the flattened L axis (with a W-element halo) for planes
    # too large for VMEM (e.g. 4K frames); currently a whole plane must fit.

    nblocks = -(-planes // B)
    # v7x has 2 TensorCores; v5e/v6e have 1, so a second "parallel" partition
    # there would only add padding and accumulator writebacks.
    P = 2 if (is_v7 and nblocks >= 2) else 1
    steps = -(-nblocks // P)

    needs_mask = (P * steps * B) != planes      # ragged tail / over-count blocks
    needs_clamp = (P * steps) != nblocks        # fully out-of-range block indices

    xf = x.reshape(planes, L)                   # contiguous reshape, no copy
    yf = y.reshape(planes, L)
    w_mask = ((jnp.arange(L - 1, dtype=jnp.int32) % W) != (W - 1))
    w_mask = w_mask.astype(jnp.float32).reshape(1, L - 1)

    if needs_clamp:
        def in_idx(p, i):
            return (jnp.minimum(p * steps + i, nblocks - 1), 0)
    else:
        def in_idx(p, i):
            return (p * steps + i, 0)

    in_spec = pl.BlockSpec((B, L), in_idx)
    mask_spec = pl.BlockSpec((1, L - 1), lambda p, i: (0, 0))
    h_out_spec = pl.BlockSpec((1, 1, L - W), lambda p, i: (p, 0, 0))
    w_out_spec = pl.BlockSpec((1, 1, L - 1), lambda p, i: (p, 0, 0))

    kernel = functools.partial(
        _gradloss_kernel, planes=planes, block_planes=B, steps=steps,
        width=W, needs_mask=needs_mask)

    h_acc, w_acc = pl.pallas_call(
        kernel,
        out_shape=(
            jax.ShapeDtypeStruct((P, 1, L - W), jnp.float32),
            jax.ShapeDtypeStruct((P, 1, L - 1), jnp.float32),
        ),
        grid_spec=pltpu.PrefetchScalarGridSpec(
            num_scalar_prefetch=0,
            grid=(P, steps),
            in_specs=[mask_spec, in_spec, in_spec],
            out_specs=[h_out_spec, w_out_spec],
        ),
        compiler_params=pltpu.CompilerParams(
            dimension_semantics=("parallel", "arbitrary"),
            vmem_limit_bytes=vmem_limit,
        ),
    )(w_mask, xf, yf)

    h_count = planes * (H - 1) * W
    w_count = planes * H * (W - 1)
    h_loss = jnp.sum(h_acc) / jnp.float32(h_count)
    w_loss = jnp.sum(w_acc) / jnp.float32(w_count)
    return jnp.float32(grad_loss_weight) * (h_loss + w_loss)


def _grad_loss_ref(x, y, grad_loss_weight=1.0):
    """Pure-JAX reference (mirrors the PyTorch module)."""
    x = x.astype(jnp.float32)
    y = y.astype(jnp.float32)
    x_h = x[:, :, 1:, :] - x[:, :, :-1, :]
    x_w = x[:, :, :, 1:] - x[:, :, :, :-1]
    y_h = y[:, :, 1:, :] - y[:, :, :-1, :]
    y_w = y[:, :, :, 1:] - y[:, :, :, :-1]
    h_loss = jnp.mean((x_h - y_h) ** 2)
    w_loss = jnp.mean((x_w - y_w) ** 2)
    return grad_loss_weight * (h_loss + w_loss)


if __name__ == "__main__":
    key = jax.random.PRNGKey(0)
    kx, ky = jax.random.split(key)

    # Primary test: nominal small shape (single block, no masking path).
    N, C, H, W = 2, 4, 16, 16
    x = jax.random.normal(kx, (N, C, H, W), dtype=jnp.float32)
    y = jax.random.normal(ky, (N, C, H, W), dtype=jnp.float32)
    out = jax.block_until_ready(grad_loss(x, y, grad_loss_weight=1.0))
    ref = _grad_loss_ref(x, y, grad_loss_weight=1.0)
    assert jnp.allclose(out, ref, rtol=1e-5, atol=1e-5), (out, ref)

    # Secondary test: ragged plane count (21 planes, block of 16) exercises the
    # multi-step path and the in-kernel tail masking (no host-side padding).
    N2, C2, H2, W2 = 3, 7, 8, 24
    k1, k2 = jax.random.split(ky)
    x2 = jax.random.normal(k1, (N2, C2, H2, W2), dtype=jnp.float32)
    y2 = jax.random.normal(k2, (N2, C2, H2, W2), dtype=jnp.float32)
    out2 = jax.block_until_ready(
        grad_loss(x2, y2, grad_loss_weight=0.5, block_planes=16))
    ref2 = _grad_loss_ref(x2, y2, grad_loss_weight=0.5)
    assert jnp.allclose(out2, ref2, rtol=1e-5, atol=1e-5), (out2, ref2)

    # Third test: bf16 inputs (kernel upcasts to f32 before differencing).
    N3, C3, H3, W3 = 2, 3, 8, 16
    k3, k4 = jax.random.split(k2)
    x3 = jax.random.normal(k3, (N3, C3, H3, W3), dtype=jnp.float32).astype(jnp.bfloat16)
    y3 = jax.random.normal(k4, (N3, C3, H3, W3), dtype=jnp.float32).astype(jnp.bfloat16)
    out3 = jax.block_until_ready(grad_loss(x3, y3, grad_loss_weight=2.0))
    ref3 = _grad_loss_ref(x3, y3, grad_loss_weight=2.0)
    assert jnp.allclose(out3, ref3, rtol=1e-5, atol=1e-5), (out3, ref3)

    print("KERNEL_OK")
</pallas_src>

<mosaic_0001>
module attributes {stable_mosaic.version = 11 : i64} {
  func.func @_gradloss_kernel(%arg0: i32, %arg1: i32, %arg2: memref<1x255xf32, #tpu.memory_space<vmem>>, %arg3: memref<8x256xf32, #tpu.memory_space<vmem>>, %arg4: memref<8x256xf32, #tpu.memory_space<vmem>>, %arg5: memref<1x1x240xf32, #tpu.memory_space<vmem>>, %arg6: memref<1x1x255xf32, #tpu.memory_space<vmem>>) attributes {dimension_semantics = [#tpu.dimension_semantics<parallel>, #tpu.dimension_semantics<arbitrary>], iteration_bounds = array<i64: 1, 1>, scalar_prefetch = 0 : i64, scratch_operands = 0 : i64, tpu.core_type = #tpu.core_type<tc>, window_params = [{pipeline_mode = #tpu.pipeline_mode<synchronous>, transform_indices = @transform_0, window_bounds = array<i64: 1, 255>}, {transform_indices = @transform_1, window_bounds = array<i64: 8, 256>}, {transform_indices = @transform_2, window_bounds = array<i64: 8, 256>}, {transform_indices = @transform_3, window_bounds = array<i64: 1, 1, 240>}, {transform_indices = @transform_4, window_bounds = array<i64: 1, 1, 255>}]} {
    %c0_i32 = arith.constant 0 : i32
    %0 = arith.cmpi eq, %arg1, %c0_i32 : i32
    %1 = arith.extui %0 : i1 to i32
    %c0_i32_0 = arith.constant 0 : i32
    %2 = arith.cmpi ne, %1, %c0_i32_0 : i32
    scf.if %2 {
      %cst_19 = arith.constant 0.000000e+00 : f32
      %29 = vector.broadcast %cst_19 : f32 to vector<1x1x240xf32>
      %c0_20 = arith.constant 0 : index
      %c0_21 = arith.constant 0 : index
      %c0_22 = arith.constant 0 : index
      %30 = vector.load %arg5[%c0_20, %c0_21, %c0_22] : memref<1x1x240xf32, #tpu.memory_space<vmem>>, vector<1x1x240xf32>
      tpu.vector_store %arg5[%c0_20, %c0_21, %c0_22], %29 {strides = array<i32>} : memref<1x1x240xf32, #tpu.memory_space<vmem>>, vector<1x1x240xf32>,
      %cst_23 = arith.constant 0.000000e+00 : f32
      %31 = vector.broadcast %cst_23 : f32 to vector<1x1x255xf32>
      %c0_24 = arith.constant 0 : index
      %c0_25 = arith.constant 0 : index
      %c0_26 = arith.constant 0 : index
      %32 = vector.load %arg6[%c0_24, %c0_25, %c0_26] : memref<1x1x255xf32, #tpu.memory_space<vmem>>, vector<1x1x255xf32>
      tpu.vector_store %arg6[%c0_24, %c0_25, %c0_26], %31 {strides = array<i32>} : memref<1x1x255xf32, #tpu.memory_space<vmem>>, vector<1x1x255xf32>,
    } else {
    }
    %c0 = arith.constant 0 : index
    %c0_1 = arith.constant 0 : index
    %3 = vector.load %arg3[%c0, %c0_1] : memref<8x256xf32, #tpu.memory_space<vmem>>, vector<8x256xf32>
    %c0_2 = arith.constant 0 : index
    %c0_3 = arith.constant 0 : index
    %4 = vector.load %arg4[%c0_2, %c0_3] : memref<8x256xf32, #tpu.memory_space<vmem>>, vector<8x256xf32>
    %5 = arith.subf %3, %4 : vector<8x256xf32>
    %6 = vector.extract_strided_slice %5 {offsets = [0, 16], sizes = [8, 240], strides = [1, 1]} : vector<8x256xf32> to vector<8x240xf32>
    %7 = vector.extract_strided_slice %5 {offsets = [0, 0], sizes = [8, 240], strides = [1, 1]} : vector<8x256xf32> to vector<8x240xf32>
    %8 = arith.subf %6, %7 : vector<8x240xf32>
    %9 = vector.extract_strided_slice %5 {offsets = [0, 1], sizes = [8, 255], strides = [1, 1]} : vector<8x256xf32> to vector<8x255xf32>
    %10 = vector.extract_strided_slice %5 {offsets = [0, 0], sizes = [8, 255], strides = [1, 1]} : vector<8x256xf32> to vector<8x255xf32>
    %11 = arith.subf %9, %10 : vector<8x255xf32>
    %12 = arith.mulf %8, %8 : vector<8x240xf32>
    %13 = arith.mulf %11, %11 : vector<8x255xf32>
    %c0_4 = arith.constant 0 : index
    %c0_5 = arith.constant 0 : index
    %14 = vector.load %arg2[%c0_4, %c0_5] : memref<1x255xf32, #tpu.memory_space<vmem>>, vector<1x255xf32>
    %15 = vector.broadcast %14 : vector<1x255xf32> to vector<8x255xf32>
    %16 = arith.mulf %13, %15 : vector<8x255xf32>
    %c0_6 = arith.constant 0 : index
    %c0_7 = arith.constant 0 : index
    %c0_8 = arith.constant 0 : index
    %17 = vector.load %arg5[%c0_6, %c0_7, %c0_8] : memref<1x1x240xf32, #tpu.memory_space<vmem>>, vector<1x1x240xf32>
    %cst = arith.constant dense<0.000000e+00> : vector<240xf32>
    %18 = vector.multi_reduction <add>, %12, %cst [0] : vector<8x240xf32> to vector<240xf32>
    %19 = vector.shape_cast %18 : vector<240xf32> to vector<1x240xf32>
    %20 = vector.shape_cast %19 : vector<1x240xf32> to vector<1x1x240xf32>
    %21 = arith.addf %17, %20 : vector<1x1x240xf32>
    %c0_9 = arith.constant 0 : index
    %c0_10 = arith.constant 0 : index
    %c0_11 = arith.constant 0 : index
    %22 = vector.load %arg5[%c0_9, %c0_10, %c0_11] : memref<1x1x240xf32, #tpu.memory_space<vmem>>, vector<1x1x240xf32>
    tpu.vector_store %arg5[%c0_9, %c0_10, %c0_11], %21 {strides = array<i32>} : memref<1x1x240xf32, #tpu.memory_space<vmem>>, vector<1x1x240xf32>,
    %c0_12 = arith.constant 0 : index
    %c0_13 = arith.constant 0 : index
    %c0_14 = arith.constant 0 : index
    %23 = vector.load %arg6[%c0_12, %c0_13, %c0_14] : memref<1x1x255xf32, #tpu.memory_space<vmem>>, vector<1x1x255xf32>
    %cst_15 = arith.constant dense<0.000000e+00> : vector<255xf32>
    %24 = vector.multi_reduction <add>, %16, %cst_15 [0] : vector<8x255xf32> to vector<255xf32>
    %25 = vector.shape_cast %24 : vector<255xf32> to vector<1x255xf32>
    %26 = vector.shape_cast %25 : vector<1x255xf32> to vector<1x1x255xf32>
    %27 = arith.addf %23, %26 : vector<1x1x255xf32>
    %c0_16 = arith.constant 0 : index
    %c0_17 = arith.constant 0 : index
    %c0_18 = arith.constant 0 : index
    %28 = vector.load %arg6[%c0_16, %c0_17, %c0_18] : memref<1x1x255xf32, #tpu.memory_space<vmem>>, vector<1x1x255xf32>
    tpu.vector_store %arg6[%c0_16, %c0_17, %c0_18], %27 {strides = array<i32>} : memref<1x1x255xf32, #tpu.memory_space<vmem>>, vector<1x1x255xf32>,
    return
  }
  func.func @transform_0(%arg0: i32, %arg1: i32) -> (i32, i32) {
    %c0_i32 = arith.constant 0 : i32
    %c0_i32_0 = arith.constant 0 : i32
    %c0_i32_1 = arith.constant 0 : i32
    return %c0_i32, %c0_i32_0 : i32, i32
  }
  func.func @transform_1(%arg0: i32, %arg1: i32) -> (i32, i32) {
    %c1_i32 = arith.constant 1 : i32
    %0 = arith.muli %arg0, %c1_i32 : i32
    %1 = arith.addi %0, %arg1 : i32
    %c0_i32 = arith.constant 0 : i32
    %c0_i32_0 = arith.constant 0 : i32
    return %1, %c0_i32 : i32, i32
  }
  func.func @transform_2(%arg0: i32, %arg1: i32) -> (i32, i32) {
    %c1_i32 = arith.constant 1 : i32
    %0 = arith.muli %arg0, %c1_i32 : i32
    %1 = arith.addi %0, %arg1 : i32
    %c0_i32 = arith.constant 0 : i32
    %c0_i32_0 = arith.constant 0 : i32
    return %1, %c0_i32 : i32, i32
  }
  func.func @transform_3(%arg0: i32, %arg1: i32) -> (i32, i32, i32) {
    %c0_i32 = arith.constant 0 : i32
    %c0_i32_0 = arith.constant 0 : i32
    %c0_i32_1 = arith.constant 0 : i32
    return %arg0, %c0_i32, %c0_i32_0 : i32, i32, i32
  }
  func.func @transform_4(%arg0: i32, %arg1: i32) -> (i32, i32, i32) {
    %c0_i32 = arith.constant 0 : i32
    %c0_i32_0 = arith.constant 0 : i32
    %c0_i32_1 = arith.constant 0 : i32
    return %arg0, %c0_i32, %c0_i32_0 : i32, i32, i32
  }
}

</mosaic_0001>

<llo_original>
// kernel: tpu_custom_call.1
$region0: #{tpu_custom_call.1}
  #allocation0 [shape = 'u32[]', space=smem, size = 0x4, offset = 0x4, fixed_abs, tag = 'smem constant byte address 0x4 - core index']
  #allocation1 [shape = 'u32[72,128]{1,0:T(1,128)}', space=vmem, size = 0x9000, scoped, tag = 'internal scratch']
  %s0 = inlined_call_operand.hbm [shape: f32[1,255], index: 0, kind: input, shape index: {}]
  %s1 = inlined_call_operand.hbm [shape: f32[8,256], index: 1, kind: input, shape index: {}]
  %s2 = inlined_call_operand.hbm [shape: f32[8,256], index: 2, kind: input, shape index: {}]
  %s3 = inlined_call_operand.hbm [shape: f32[1,1,240], index: 3, kind: output, shape index: {0}]
  %s4 = inlined_call_operand.hbm [shape: f32[1,1,255], index: 4, kind: output, shape index: {1}]
  %5 = xla_tuple %s3, %s4
  %s6 = sld [smem:[#allocation0]]
  $region46: #{tpu_custom_call.1} parent=0
    _
  %s8 = ssub.s32 1, %s6
  %s9 = scalar_select 0, %s8, %s6
  $region1: #{tpu_custom_call.1} parent=0
    #allocation2 [shape = 'u8[1024]{0}', space=vmem, size = 0x400, scoped, tag = 'input window, operand 0, single buffered']
    #allocation3 [shape = 's32[1]{0}', space=sflag, size = 0x4, scoped, tag = 'scoped memory for tpu_custom_call.1']
    #allocation4 [shape = 's32[1]{0}', space=sflag, size = 0x4, scoped, tag = 'scoped memory for tpu_custom_call.1']
    #allocation5 [shape = 'u8[8192]{0}', space=vmem, size = 0x2000, scoped, tag = 'input window, operand 1, single buffered']
    #allocation6 [shape = 's32[1]{0}', space=sflag, size = 0x4, scoped, tag = 'scoped memory for tpu_custom_call.1']
    #allocation7 [shape = 'u8[8192]{0}', space=vmem, size = 0x2000, scoped, tag = 'input window, operand 2, single buffered']
    #allocation8 [shape = 'u8[1024]{0}', space=vmem, size = 0x400, scoped, tag = 'output window, operand 0, single buffered']
    #allocation9 [shape = 'u8[1024]{0}', space=vmem, size = 0x400, scoped, tag = 'output window, operand 1, single buffered']
    #allocation10 [shape = 's32[1]{0}', space=sflag, size = 0x4, scoped, tag = 'scoped memory for tpu_custom_call.1']
    %10 = vsyncpa [#allocation3], 0
    %11 = vsyncpa [#allocation6], 0
    %12 = vsyncpa [#allocation4], 0
    %13 = vsyncpa [#allocation10], 0
    // Predicated region
    $region2: #{tpu_custom_call.1} parent=1 // pred_check
      _
    $region3: #{tpu_custom_call.1} parent=1 // pred_check_branch
      %15 = sbr.rel (0) target = $region5
    $region4: #{tpu_custom_call.1} parent=1 // pred_region
      %17 = vsyncadd [#allocation3], 0
      %s19 = sshll.u32 %s0, 4
      %s20 = int_to_ptr.hbm [resolvable:$true] %s19
      %s21 = sshll.u32 [#allocation2], 4
      %s22 = int_to_ptr.vmem [resolvable:$true] %s21
      %24 = dma.hbm_to_vmem [thread:$0]  %s20, 32, %s22, [#allocation3]
    $region5: #{tpu_custom_call.1} parent=1 // pred_fallthru
      _
    // Predicated region
    $region6: #{tpu_custom_call.1} parent=1 // pred_check
      _
    $region7: #{tpu_custom_call.1} parent=1 // pred_check_branch
      %26 = sbr.rel (0) target = $region9
    $region8: #{tpu_custom_call.1} parent=1 // pred_region
      %s27 = sadd.s32 0, 0
      %29 = vsyncadd [#allocation6], 0
      %s30 = smul.addr %s27, 2
      %s31 = smul.addr %s30, 8
      %s32 = scalar_lea.hbm %s1, %s31
      %s34 = sshll.u32 %s32, 4
      %s35 = int_to_ptr.hbm [resolvable:$true] %s34
      %s36 = sshll.u32 [#allocation5], 4
      %s37 = int_to_ptr.vmem [resolvable:$true] %s36
      %39 = dma.hbm_to_vmem [thread:$0]  %s35, 256, %s37, [#allocation6]
    $region9: #{tpu_custom_call.1} parent=1 // pred_fallthru
      _
    // Predicated region
    $region10: #{tpu_custom_call.1} parent=1 // pred_check
      _
    $region11: #{tpu_custom_call.1} parent=1 // pred_check_branch
      %41 = sbr.rel (0) target = $region13
    $region12: #{tpu_custom_call.1} parent=1 // pred_region
      %s42 = sadd.s32 0, 0
      %44 = vsyncadd [#allocation6], 0
      %s45 = smul.addr %s42, 2
      %s46 = smul.addr %s45, 8
      %s47 = scalar_lea.hbm %s2, %s46
      %s49 = sshll.u32 %s47, 4
      %s50 = int_to_ptr.hbm [resolvable:$true] %s49
      %s51 = sshll.u32 [#allocation7], 4
      %s52 = int_to_ptr.vmem [resolvable:$true] %s51
      %54 = dma.hbm_to_vmem [thread:$0]  %s50, 256, %s52, [#allocation6]
    $region13: #{tpu_custom_call.1} parent=1 // pred_fallthru
      _
    // Predicated region
    $region14: #{tpu_custom_call.1} parent=1 // pred_check
      _
    $region15: #{tpu_custom_call.1} parent=1 // pred_check_branch
      %56 = sbr.rel (0) target = $region17
    $region16: #{tpu_custom_call.1} parent=1 // pred_region
      %58 = dma.done [#allocation3], 32
    $region17: #{tpu_custom_call.1} parent=1 // pred_fallthru
      _
    // Predicated region
    $region18: #{tpu_custom_call.1} parent=1 // pred_check
      _
    $region19: #{tpu_custom_call.1} parent=1 // pred_check_branch
      %60 = sbr.rel (0) target = $region21
    $region20: #{tpu_custom_call.1} parent=1 // pred_region
      %62 = dma.done [#allocation6], 256
    $region21: #{tpu_custom_call.1} parent=1 // pred_fallthru
      _
    // Predicated region
    $region22: #{tpu_custom_call.1} parent=1 // pred_check
      _
    $region23: #{tpu_custom_call.1} parent=1 // pred_check_branch
      %64 = sbr.rel (0) target = $region25
    $region24: #{tpu_custom_call.1} parent=1 // pred_region
      %66 = dma.done [#allocation6], 256
    $region25: #{tpu_custom_call.1} parent=1 // pred_fallthru
      _
    %s67 = sadd.s32 0, 0
    %s68 = sadd.s32 0, 0
    %p69 = scmp.eq.s32.totalorder 0, 0
    // Predicated region
    $region26: #{tpu_custom_call.1} parent=1 // pred_check
      %p70 = pneg %p69
    $region27: #{tpu_custom_call.1} parent=1 // pred_check_branch
      %72 = sbr.rel (%p70) target = $region29
    $region28: #{tpu_custom_call.1} parent=1 // pred_region
      %v73 = vlaneseq
      %vm74 = vcmp.ge.s32.totalorder %v73, 0
      %vm75 = vcmp.lt.s32.totalorder %v73, 240
      %vm76 = vmand %vm74, %vm75
      %77 = vst.msk [vmem:[#allocation8] sm:$0x3] %vm76, 0.0
      %vm78 = vcmp.lt.s32.totalorder %v73, 255
      %vm79 = vmand %vm74, %vm78
      %80 = vst.msk [vmem:[#allocation9] sm:$0x3] %vm79, 0.0
    $region29: #{tpu_custom_call.1} parent=1 // pred_fallthru
      _
    %v81 = vld [vmem:[#allocation5] sm:$0xff]
    %v82 = vld [vmem:[#allocation5 + $0x8] sm:$0xff]
    %v83 = vld [vmem:[#allocation7] sm:$0xff]
    %v84 = vld [vmem:[#allocation7 + $0x8] sm:$0xff]
    %v85 = vsub.f32 %v81, %v83
    %v86 = vsub.f32 %v82, %v84
    %89 = vrot.lane.b32.xlu0 %v85, 16
    %v90 = vpop.permute.xlu0 %89
    %91 = vrot.lane.b32.xlu0 %v86, 16
    %v92 = vpop.permute.xlu0 %91
    %vm93 = vcmask 130048
    %v94 = vsel %vm93, %v90, %v92
    %v97 = vsub.f32 %v85, %v90
    %v98 = vsub.f32 %v86, %v94
    %99 = vrot.lane.b32.xlu0 %v85, 1
    %v100 = vpop.permute.xlu0 %99
    %101 = vrot.lane.b32.xlu0 %v86, 1
    %v102 = vpop.permute.xlu0 %101
    %vm103 = vcmask 7168
    %v104 = vsel %vm103, %v100, %v102
    %v107 = vsub.f32 %v85, %v100
    %v108 = vsub.f32 %v86, %v104
    %v109 = vmul.f32 %v97, %v97
    %v110 = vmul.f32 %v98, %v98
    %v111 = vmul.f32 %v107, %v107
    %v112 = vmul.f32 %v108, %v108
    %v113 = vld [vmem:[#allocation2] sm:$0x3]
    %v115 = vperm.slane %v113, 0
    %v116 = vperm.slane %v113, 1
    %117 = vrot.lane.b32.xlu0 %v115, 1
    %v118 = vpop.permute.xlu0 %117
    %119 = vrot.lane.b32.xlu0 %v116, 1
    %v120 = vpop.permute.xlu0 %119
    %v121 = vsel %vm103, %v118, %v120
    %v124 = vmul.f32 %v111, %v118
    %v125 = vmul.f32 %v112, %v121
    %v126 = vld [vmem:[#allocation8] sm:$0x3]
    %vm127 = vcmask 1047680
    %v128 = vsel %vm127, %v109, 0.0
    %v129 = vrot.slane %v128, 4
    %v130 = vadd.f32 %v128, %v129
    %v131 = vrot.slane %v130, 2
    %v132 = vadd.f32 %v130, %v131
    %v133 = vrot.slane %v132, 1
    %v134 = vadd.f32 %v132, %v133
    %v135 = vrot.slane %v110, 4
    %v136 = vadd.f32 %v110, %v135
    %v137 = vrot.slane %v136, 2
    %v138 = vadd.f32 %v136, %v137
    %v139 = vrot.slane %v138, 1
    %v140 = vadd.f32 %v138, %v139
    %v143 = vrot.slane %v140, 7
    %vm144 = vcmask 1040384
    %v145 = vsel %vm144, %v134, %v143
    %146 = vrot.lane.b32.xlu0 %v145, 112
    %v147 = vpop.permute.xlu0 %146
    %v148 = vrot.slane %v147, 1
    %vm149 = vcmask 916480
    %v150 = vsel %vm149, %v147, %v148
    %v152 = vadd.f32 %v126, %v150
    %v153 = vlaneseq
    %vm154 = vcmp.ge.s32.totalorder %v153, 0
    %vm155 = vcmp.lt.s32.totalorder %v153, 240
    %vm156 = vmand %vm154, %vm155
    %157 = vst.msk [vmem:[#allocation8] sm:$0x3] %vm156, %v152
    %v158 = vld [vmem:[#allocation9] sm:$0x3]
    %vm159 = vcmask 1047560
    %v160 = vsel %vm159, %v124, 0.0
    %v161 = vrot.slane %v160, 4
    %v162 = vadd.f32 %v160, %v161
    %v163 = vrot.slane %v162, 2
    %v164 = vadd.f32 %v162, %v163
    %v165 = vrot.slane %v164, 1
    %v166 = vadd.f32 %v164, %v165
    %v167 = vrot.slane %v125, 4
    %v168 = vadd.f32 %v125, %v167
    %v169 = vrot.slane %v168, 2
    %v170 = vadd.f32 %v168, %v169
    %v171 = vrot.slane %v170, 1
    %v172 = vadd.f32 %v170, %v171
    %v175 = vrot.slane %v172, 7
    %v176 = vsel %vm144, %v166, %v175
    %177 = vrot.lane.b32.xlu0 %v176, 127
    %v178 = vpop.permute.xlu0 %177
    %v179 = vrot.slane %v178, 1
    %vm180 = vcmask 1039360
    %v181 = vsel %vm180, %v178, %v179
    %v183 = vadd.f32 %v158, %v181
    %vm184 = vcmp.lt.s32.totalorder %v153, 255
    %vm185 = vmand %vm154, %vm184
    %186 = vst.msk [vmem:[#allocation9] sm:$0x3] %vm185, %v183
    // Predicated region
    $region30: #{tpu_custom_call.1} parent=1 // pred_check
      _
    $region31: #{tpu_custom_call.1} parent=1 // pred_check_branch
      %188 = sbr.rel (0) target = $region33
    $region32: #{tpu_custom_call.1} parent=1 // pred_region
      %190 = vsyncadd [#allocation4], 0
      %s192 = sshll.u32 [#allocation8], 4
      %s193 = int_to_ptr.vmem [resolvable:$true] %s192
      %s194 = sshll.u32 %s3, 4
      %s195 = int_to_ptr.hbm [resolvable:$true] %s194
      %197 = dma.vmem_to_hbm [thread:$0]  %s193, 32, %s195, [#allocation4]
    $region33: #{tpu_custom_call.1} parent=1 // pred_fallthru
      _
    // Predicated region
    $region34: #{tpu_custom_call.1} parent=1 // pred_check
      _
    $region35: #{tpu_custom_call.1} parent=1 // pred_check_branch
      %199 = sbr.rel (0) target = $region37
    $region36: #{tpu_custom_call.1} parent=1 // pred_region
      %201 = vsyncadd [#allocation10], 0
      %s203 = sshll.u32 [#allocation9], 4
      %s204 = int_to_ptr.vmem [resolvable:$true] %s203
      %s205 = sshll.u32 %s4, 4
      %s206 = int_to_ptr.hbm [resolvable:$true] %s205
      %208 = dma.vmem_to_hbm [thread:$0]  %s204, 32, %s206, [#allocation10]
    $region37: #{tpu_custom_call.1} parent=1 // pred_fallthru
      _
    // Predicated region
    $region38: #{tpu_custom_call.1} parent=1 // pred_check
      _
    $region39: #{tpu_custom_call.1} parent=1 // pred_check_branch
      %210 = sbr.rel (0) target = $region41
    $region40: #{tpu_custom_call.1} parent=1 // pred_region
      %212 = dma.done [#allocation4], 32
    $region41: #{tpu_custom_call.1} parent=1 // pred_fallthru
      _
    // Predicated region
    $region42: #{tpu_custom_call.1} parent=1 // pred_check
      _
    $region43: #{tpu_custom_call.1} parent=1 // pred_check_branch
      %214 = sbr.rel (0) target = $region45
    $region44: #{tpu_custom_call.1} parent=1 // pred_region
      %216 = dma.done [#allocation10], 32
    $region45: #{tpu_custom_call.1} parent=1 // pred_fallthru
      _
    %217 = vsyncpa [#allocation3], 1
    %218 = vsyncpa [#allocation6], 1
    %219 = vsyncpa [#allocation4], 1
    %220 = vsyncpa [#allocation10], 1

</llo_original>
